<compile_context>
chip_gen: v5e
topology: v5e:2x2
jax: 0.10.0
libtpu: 0.0.40
codegen_flags: <defaults>
</compile_context>

<pallas_src>
import functools

import jax
import jax.numpy as jnp
from jax import lax
from jax.experimental import pallas as pl
from jax.experimental.pallas import tpu as pltpu

# Model dimensions (small, consistent with the module constructor hints).
N_STATE = 4        # n    : measurement dim (y_)
M_CTRL = 2         # m    : control dim (u)
N_XI = 32          # n_xi : controller state dim
L_DIM = 8          # l    : nonlinearity dim
K_IN = N_XI + N_STATE            # 36 : fused kernel input width  [xi | y]
PACK = L_DIM + N_XI + M_CTRL     # 42 : fused kernel output width [pre | xi_next | u]
EPS_E = 1e-3                     # PsiU_nonstab.epsilon
PSIU_SCALE = 20.0                # "return 20 * u" inside PsiU_nonstab
OUTPUT_AMP = 20.0 * 0.1          # ControllerRNN.output_amplification
U_SCALE = PSIU_SCALE * OUTPUT_AMP

# Timesteps folded into one grid iteration.  Per-block I/O buffers at B=8 are a
# few hundred KiB (double-buffered), far below the scoped-VMEM default on every
# generation (v5e/v6e 128 MiB, v7x 64 MiB physical).
T_BLK = 64


# ----------------------------------------------------------------------------
# Kernel: T_BLK ControllerRNN steps per grid iteration; xi carried in VMEM
# ----------------------------------------------------------------------------
def _controller_rnn_kernel(y_ref, xi0_ref, wc_ref, bc_ref, ew_ref,
                           u_ref, xi_out_ref, xi_scr,
                           *, t_blk, t_total, mask_tail):
    tb = pl.program_id(0)

    @pl.when(tb == 0)
    def _():
        xi_scr[...] = xi0_ref[...]

    wc = wc_ref[...]          # (K_IN, PACK) fused weights (E⁻¹, 1/Λ, 40 folded in)
    bc = bc_ref[...]          # (1, PACK)    fused bias
    ew = ew_ref[...]          # (L_DIM, PACK) rank-1 rows for the eps recurrence

    def step(s, xi):
        y = y_ref[s]                                            # (B, n)
        xw = jnp.concatenate([xi, y], axis=-1)                  # (B, 36)
        comb = jnp.dot(xw, wc, preferred_element_type=jnp.float32) + bc   # (B, 42)

        # eps recurrence: column i of `acc` holds (D11[i,:]·eps_<i)/Lambda[i];
        # columns >= L_DIM accumulate the B1/D21 (and E⁻¹-folded) contributions
        # of each eps_i as rank-1 updates, off the serial critical path.
        acc = jnp.zeros_like(comb)
        for i in range(L_DIM):                                  # static unroll, l = 8
            e_i = jnp.tanh(comb[:, i:i + 1] + acc[:, i:i + 1])  # (B, 1)
            acc = acc + e_i * ew[i:i + 1, :]

        full = comb + acc                                       # (B, 42)
        xi_new = full[:, L_DIM:L_DIM + N_XI]                    # (B, n_xi)
        u_ref[s] = full[:, L_DIM + N_XI:]                       # (B, m), already 40*u

        if mask_tail:   # static flag: only traced when T was padded to a block multiple
            xi_new = jnp.where(tb * t_blk + s < t_total, xi_new, xi)
        return xi_new

    xi_fin = lax.fori_loop(0, t_blk, step, xi_scr[...])
    xi_scr[...] = xi_fin            # carry state to the next grid step
    xi_out_ref[...] = xi_fin        # resident output; written back to HBM once at the end


# ----------------------------------------------------------------------------
# Parameter preprocessing (done once, outside the kernel)
# ----------------------------------------------------------------------------
def make_kernel_params(torch_params):
    """Stack / fold the PsiU_nonstab parameters into 3 kernel arrays."""
    (B2, C2, D21, D22, D12, bxi, bv, bu, F_, B1, halfE, Lam, C1, D11) = torch_params
    inv_lam = 1.0 / Lam                              # fold 1/Lambda into the weights
    bv_eff = bv.at[0].set(0.0)                       # torch never adds bv[0] on row 0
    e_mat = halfE @ halfE.T + EPS_E * jnp.eye(N_XI, dtype=jnp.float32)
    # TODO(synk): matrix inverse has no Pallas equivalent; it is parameter-only,
    # so it is precomputed here and folded into the fused weights below.
    e_inv = jnp.linalg.inv(e_mat)                    # symmetric

    # columns [0:l)       -> pre-activation v_i / Lambda_i
    w_pre = jnp.concatenate([C1.T, D12.T], axis=0) * inv_lam[None, :]     # (36, 8)
    b_pre = (bv_eff * inv_lam)[None, :]                                   # (1, 8)
    # columns [l:l+n_xi)  -> xi_next (E⁻¹ folded in)
    w_xi = jnp.concatenate([F_.T, B2.T], axis=0) @ e_inv                  # (36, 32)
    b_xi = (bxi @ e_inv)[None, :]                                         # (1, 32)
    # columns [l+n_xi:)   -> 40*u (20 * output_amplification folded in)
    w_u = U_SCALE * jnp.concatenate([C2.T, D22.T], axis=0)                # (36, 2)
    b_u = (U_SCALE * bu)[None, :]                                         # (1, 2)

    w_comb = jnp.concatenate([w_pre, w_xi, w_u], axis=1)                  # (36, 42)
    b_comb = jnp.concatenate([b_pre, b_xi, b_u], axis=1)                  # (1, 42)
    # rank-1 rows: row i is eps_i's contribution to every packed column
    eps_all = jnp.concatenate([D11.T * inv_lam[None, :],                  # (8, 8)
                               B1.T @ e_inv,                              # (8, 32)
                               U_SCALE * D21.T], axis=1)                  # (8, 42)
    return {"w_comb": w_comb.astype(jnp.float32),
            "b_comb": b_comb.astype(jnp.float32),
            "eps_all": eps_all.astype(jnp.float32)}


# ----------------------------------------------------------------------------
# Wrapper: full rollout fused in ONE pallas_call
# ----------------------------------------------------------------------------
def _rollout_pallas(y_seq, xi0, kp):
    T, batch, _ = y_seq.shape
    t_blk = T_BLK if T >= T_BLK else T
    nb = -(-T // t_blk)
    t_pad = nb * t_blk
    y_seq = y_seq.astype(jnp.float32)
    if t_pad != T:
        y_seq = jnp.pad(y_seq, ((0, t_pad - T), (0, 0), (0, 0)))

    kernel = functools.partial(_controller_rnn_kernel, t_blk=t_blk,
                               t_total=T, mask_tail=(t_pad != T))
    u_pad, xi_fin = pl.pallas_call(
        kernel,
        out_shape=(jax.ShapeDtypeStruct((t_pad, batch, M_CTRL), jnp.float32),
                   jax.ShapeDtypeStruct((batch, N_XI), jnp.float32)),
        grid_spec=pltpu.PrefetchScalarGridSpec(
            num_scalar_prefetch=0,
            grid=(nb,),
            in_specs=[
                pl.BlockSpec((t_blk, batch, N_STATE), lambda b: (b, 0, 0)),  # y stream
                pl.BlockSpec((batch, N_XI), lambda b: (0, 0)),               # xi0 (resident)
                pl.BlockSpec((K_IN, PACK), lambda b: (0, 0)),                # fused weights
                pl.BlockSpec((1, PACK), lambda b: (0, 0)),                   # fused bias
                pl.BlockSpec((L_DIM, PACK), lambda b: (0, 0)),               # eps rank-1 rows
            ],
            out_specs=[
                pl.BlockSpec((t_blk, batch, M_CTRL), lambda b: (b, 0, 0)),   # u stream
                pl.BlockSpec((batch, N_XI), lambda b: (0, 0)),               # final xi (resident)
            ],
            scratch_shapes=[pltpu.VMEM((batch, N_XI), jnp.float32)],
        ),
        compiler_params=pltpu.CompilerParams(
            dimension_semantics=("arbitrary",),     # xi carried sequentially across blocks
        ),
    )(y_seq, xi0.astype(jnp.float32), kp["w_comb"], kp["b_comb"], kp["eps_all"])
    return u_pad[:T], xi_fin


@jax.jit
def controller_forward(t, y_, xi, omega, kernel_params):
    """Mirror of ControllerRNN.forward: (u_, xi_, omega_) with omega_=(y_, u_).
    NOTE: for many steps prefer controller_rollout (one kernel launch) over
    calling this in a host loop."""
    del t, omega  # not used by the PyTorch module's computation
    u_seq, xi_fin = _rollout_pallas(y_[None], xi, kernel_params)
    u_ = u_seq[0]
    return u_, xi_fin, (y_, u_)


@jax.jit
def controller_rollout(y_seq, xi0, kernel_params):
    """T forward steps with xi fed back, fused in a single kernel launch."""
    return _rollout_pallas(y_seq, xi0, kernel_params)


# ----------------------------------------------------------------------------
# Pure-JAX reference (mirrors the PyTorch code)
# ----------------------------------------------------------------------------
def _e_inv_ref(torch_params):
    halfE = torch_params[10]
    return jnp.linalg.inv(halfE @ halfE.T + EPS_E * jnp.eye(N_XI, dtype=jnp.float32))


def _psiu_step_ref(y, xi, tp, e_inv):
    (B2, C2, D21, D22, D12, bxi, bv, bu, F_, B1, halfE, Lam, C1, D11) = tp
    batch = y.shape[0]
    eps = jnp.zeros((batch, L_DIM), jnp.float32)
    for i in range(L_DIM):
        v = xi @ C1[i] + eps @ D11[i] + y @ D12[i] + (bv[i] if i > 0 else 0.0)
        eps = eps.at[:, i].set(jnp.tanh(v / Lam[i]))
    e_xi = xi @ F_.T + eps @ B1.T + y @ B2.T + bxi
    xi_new = e_xi @ e_inv                         # e_inv is symmetric (== its transpose)
    u = xi @ C2.T + eps @ D21.T + y @ D22.T + bu
    return PSIU_SCALE * u, xi_new


def controller_forward_ref(t, y_, xi, torch_params):
    del t
    u20, xi_ = _psiu_step_ref(y_, xi, torch_params, _e_inv_ref(torch_params))
    u_ = OUTPUT_AMP * u20
    return u_, xi_, (y_, u_)


def controller_rollout_ref(y_seq, xi0, torch_params):
    e_inv = _e_inv_ref(torch_params)

    def scan_step(xi, y):
        u20, xi_new = _psiu_step_ref(y, xi, torch_params, e_inv)
        return xi_new, OUTPUT_AMP * u20

    xi_fin, u_seq = lax.scan(scan_step, xi0, y_seq)
    return u_seq, xi_fin


def init_torch_params(key):
    """Same layouts as PsiU_nonstab.__init__ (std=0.1); biases / Lambda / halfE
    get small perturbations so every term of forward is numerically exercised."""
    ks = jax.random.split(key, 14)
    std = 0.1
    B2 = std * jax.random.normal(ks[0], (N_XI, N_STATE), jnp.float32)
    C2 = std * jax.random.normal(ks[1], (M_CTRL, N_XI), jnp.float32)
    D21 = std * jax.random.normal(ks[2], (M_CTRL, L_DIM), jnp.float32)
    D22 = std * jax.random.normal(ks[3], (M_CTRL, N_STATE), jnp.float32)
    D12 = std * jax.random.normal(ks[4], (L_DIM, N_STATE), jnp.float32)
    bxi = 0.01 * jax.random.normal(ks[5], (N_XI,), jnp.float32)
    bv = 0.01 * jax.random.normal(ks[6], (L_DIM,), jnp.float32)
    bu = 0.01 * jax.random.normal(ks[7], (M_CTRL,), jnp.float32)
    F_ = std * jax.random.normal(ks[8], (N_XI, N_XI), jnp.float32)
    B1 = std * jax.random.normal(ks[9], (N_XI, L_DIM), jnp.float32)
    halfE = (jnp.eye(N_XI, dtype=jnp.float32)
             + 0.05 * jax.random.normal(ks[10], (N_XI, N_XI), jnp.float32))
    Lam = 1.0 + 0.1 * jnp.abs(jax.random.normal(ks[11], (L_DIM,), jnp.float32))
    C1 = std * jax.random.normal(ks[12], (L_DIM, N_XI), jnp.float32)
    D11 = std * jax.random.normal(ks[13], (L_DIM, L_DIM), jnp.float32)
    return (B2, C2, D21, D22, D12, bxi, bv, bu, F_, B1, halfE, Lam, C1, D11)


if __name__ == "__main__":
    key = jax.random.PRNGKey(0)
    kparam, ky, kxi, kseq = jax.random.split(key, 4)

    torch_params = init_torch_params(kparam)
    kernel_params = make_kernel_params(torch_params)

    B = 8     # batch of independent controller instances (f32 sublane multiple)
    T = 96    # rollout length; deliberately NOT a multiple of T_BLK (tail masking path)

    y_ = jax.random.normal(ky, (B, N_STATE), jnp.float32)
    xi = jax.random.normal(kxi, (B, N_XI), jnp.float32)
    omega = (jnp.zeros((B, N_STATE), jnp.float32),
             jnp.zeros((B, M_CTRL), jnp.float32))

    # --- single ControllerRNN.forward step (the module spec) -----------------
    u_, xi_, omega_ = controller_forward(0.0, y_, xi, omega, kernel_params)
    u_ = jax.block_until_ready(u_)
    xi_ = jax.block_until_ready(xi_)

    u_ref, xi_ref, _ = controller_forward_ref(0.0, y_, xi, torch_params)
    assert u_.shape == (B, M_CTRL) and xi_.shape == (B, N_XI)
    assert jnp.allclose(u_, u_ref, atol=5e-3, rtol=1e-3), \
        float(jnp.max(jnp.abs(u_ - u_ref)))
    assert jnp.allclose(xi_, xi_ref, atol=1e-3, rtol=1e-3), \
        float(jnp.max(jnp.abs(xi_ - xi_ref)))
    assert jnp.allclose(omega_[0], y_) and jnp.allclose(omega_[1], u_)

    # --- fused T-step rollout: one pallas_call, T_BLK steps per grid point ----
    y_seq = jax.random.normal(kseq, (T, B, N_STATE), jnp.float32)
    u_seq, xi_T = controller_rollout(y_seq, xi, kernel_params)
    u_seq = jax.block_until_ready(u_seq)
    xi_T = jax.block_until_ready(xi_T)

    u_seq_ref, xi_T_ref = controller_rollout_ref(y_seq, xi, torch_params)
    assert u_seq.shape == (T, B, M_CTRL) and xi_T.shape == (B, N_XI)
    assert jnp.allclose(u_seq, u_seq_ref, atol=1e-2, rtol=1e-3), \
        float(jnp.max(jnp.abs(u_seq - u_seq_ref)))
    assert jnp.allclose(xi_T, xi_T_ref, atol=2e-3, rtol=2e-3), \
        float(jnp.max(jnp.abs(xi_T - xi_T_ref)))

    print("KERNEL_OK")
</pallas_src>

<mosaic_0001>
module attributes {stable_mosaic.version = 11 : i64} {
  func.func @_controller_rnn_kernel(%arg0: i32, %arg1: memref<1x8x4xf32, #tpu.memory_space<vmem>>, %arg2: memref<8x32xf32, #tpu.memory_space<vmem>>, %arg3: memref<36x42xf32, #tpu.memory_space<vmem>>, %arg4: memref<1x42xf32, #tpu.memory_space<vmem>>, %arg5: memref<8x42xf32, #tpu.memory_space<vmem>>, %arg6: memref<1x8x2xf32, #tpu.memory_space<vmem>>, %arg7: memref<8x32xf32, #tpu.memory_space<vmem>>, %arg8: memref<8x32xf32, #tpu.memory_space<vmem>>) attributes {dimension_semantics = [#tpu.dimension_semantics<arbitrary>], iteration_bounds = array<i64: 1>, scalar_prefetch = 0 : i64, scratch_operands = 1 : i64, tpu.core_type = #tpu.core_type<tc>, window_params = [{transform_indices = @transform_0, window_bounds = array<i64: 1, 8, 4>}, {pipeline_mode = #tpu.pipeline_mode<synchronous>, transform_indices = @transform_1, window_bounds = array<i64: 8, 32>}, {pipeline_mode = #tpu.pipeline_mode<synchronous>, transform_indices = @transform_2, window_bounds = array<i64: 36, 42>}, {pipeline_mode = #tpu.pipeline_mode<synchronous>, transform_indices = @transform_3, window_bounds = array<i64: 1, 42>}, {pipeline_mode = #tpu.pipeline_mode<synchronous>, transform_indices = @transform_4, window_bounds = array<i64: 8, 42>}, {transform_indices = @transform_5, window_bounds = array<i64: 1, 8, 2>}, {pipeline_mode = #tpu.pipeline_mode<synchronous>, transform_indices = @transform_6, window_bounds = array<i64: 8, 32>}]} {
    %c0_i32 = arith.constant 0 : i32
    %0 = arith.cmpi eq, %arg0, %c0_i32 : i32
    %1 = arith.extui %0 : i1 to i32
    %c0_i32_0 = arith.constant 0 : i32
    %2 = arith.cmpi ne, %1, %c0_i32_0 : i32
    scf.if %2 {
      %c0_18 = arith.constant 0 : index
      %c0_19 = arith.constant 0 : index
      %96 = vector.load %arg2[%c0_18, %c0_19] : memref<8x32xf32, #tpu.memory_space<vmem>>, vector<8x32xf32>
      %c0_20 = arith.constant 0 : index
      %c0_21 = arith.constant 0 : index
      %97 = vector.load %arg8[%c0_20, %c0_21] : memref<8x32xf32, #tpu.memory_space<vmem>>, vector<8x32xf32>
      tpu.vector_store %arg8[%c0_20, %c0_21], %96 {strides = array<i32>} : memref<8x32xf32, #tpu.memory_space<vmem>>, vector<8x32xf32>,
    } else {
    }
    %c0 = arith.constant 0 : index
    %c0_1 = arith.constant 0 : index
    %3 = vector.load %arg3[%c0, %c0_1] : memref<36x42xf32, #tpu.memory_space<vmem>>, vector<36x42xf32>
    %c0_2 = arith.constant 0 : index
    %c0_3 = arith.constant 0 : index
    %4 = vector.load %arg4[%c0_2, %c0_3] : memref<1x42xf32, #tpu.memory_space<vmem>>, vector<1x42xf32>
    %c0_4 = arith.constant 0 : index
    %c0_5 = arith.constant 0 : index
    %5 = vector.load %arg5[%c0_4, %c0_5] : memref<8x42xf32, #tpu.memory_space<vmem>>, vector<8x42xf32>
    %c0_6 = arith.constant 0 : index
    %c0_7 = arith.constant 0 : index
    %6 = vector.load %arg8[%c0_6, %c0_7] : memref<8x32xf32, #tpu.memory_space<vmem>>, vector<8x32xf32>
    %c0_i32_8 = arith.constant 0 : i32
    %7 = arith.index_cast %c0_i32_8 : i32 to index
    %c0_9 = arith.constant 0 : index
    %c0_10 = arith.constant 0 : index
    %8 = vector.load %arg1[%7, %c0_9, %c0_10] : memref<1x8x4xf32, #tpu.memory_space<vmem>>, vector<1x8x4xf32>
    %9 = vector.shape_cast %8 : vector<1x8x4xf32> to vector<8x4xf32>
    %10 = tpu.concatenate %6, %9 in 1 : vector<8x32xf32>, vector<8x4xf32> -> vector<8x36xf32>
    %cst = arith.constant dense<0.000000e+00> : vector<8x42xf32>
    %11 = tpu.matmul %10, %3, %cst {dimension_numbers = #tpu.dot_dimension_numbers<[1], [0], [0], [1], [0, 0, 1, 1], [], []>} : vector<8x36xf32>, vector<36x42xf32>, vector<8x42xf32> -> vector<8x42xf32>
    %12 = vector.broadcast %4 : vector<1x42xf32> to vector<8x42xf32>
    %13 = arith.addf %11, %12 : vector<8x42xf32>
    %cst_11 = arith.constant 0.000000e+00 : f32
    %14 = vector.broadcast %cst_11 : f32 to vector<8x42xf32>
    %15 = vector.extract_strided_slice %13 {offsets = [0, 0], sizes = [8, 1], strides = [1, 1]} : vector<8x42xf32> to vector<8x1xf32>
    %16 = vector.extract_strided_slice %14 {offsets = [0, 0], sizes = [8, 1], strides = [1, 1]} : vector<8x42xf32> to vector<8x1xf32>
    %17 = arith.addf %15, %16 : vector<8x1xf32>
    %18 = math.tanh %17 : vector<8x1xf32>
    %19 = vector.extract_strided_slice %5 {offsets = [0, 0], sizes = [1, 42], strides = [1, 1]} : vector<8x42xf32> to vector<1x42xf32>
    %20 = vector.broadcast %18 : vector<8x1xf32> to vector<8x42xf32>
    %21 = vector.broadcast %19 : vector<1x42xf32> to vector<8x42xf32>
    %22 = arith.mulf %20, %21 : vector<8x42xf32>
    %23 = arith.addf %14, %22 : vector<8x42xf32>
    %24 = vector.extract_strided_slice %13 {offsets = [0, 1], sizes = [8, 1], strides = [1, 1]} : vector<8x42xf32> to vector<8x1xf32>
    %25 = vector.extract_strided_slice %23 {offsets = [0, 1], sizes = [8, 1], strides = [1, 1]} : vector<8x42xf32> to vector<8x1xf32>
    %26 = arith.addf %24, %25 : vector<8x1xf32>
    %27 = math.tanh %26 : vector<8x1xf32>
    %28 = vector.extract_strided_slice %5 {offsets = [1, 0], sizes = [1, 42], strides = [1, 1]} : vector<8x42xf32> to vector<1x42xf32>
    %29 = vector.broadcast %27 : vector<8x1xf32> to vector<8x42xf32>
    %30 = vector.broadcast %28 : vector<1x42xf32> to vector<8x42xf32>
    %31 = arith.mulf %29, %30 : vector<8x42xf32>
    %32 = arith.addf %23, %31 : vector<8x42xf32>
    %33 = vector.extract_strided_slice %13 {offsets = [0, 2], sizes = [8, 1], strides = [1, 1]} : vector<8x42xf32> to vector<8x1xf32>
    %34 = vector.extract_strided_slice %32 {offsets = [0, 2], sizes = [8, 1], strides = [1, 1]} : vector<8x42xf32> to vector<8x1xf32>
    %35 = arith.addf %33, %34 : vector<8x1xf32>
    %36 = math.tanh %35 : vector<8x1xf32>
    %37 = vector.extract_strided_slice %5 {offsets = [2, 0], sizes = [1, 42], strides = [1, 1]} : vector<8x42xf32> to vector<1x42xf32>
    %38 = vector.broadcast %36 : vector<8x1xf32> to vector<8x42xf32>
    %39 = vector.broadcast %37 : vector<1x42xf32> to vector<8x42xf32>
    %40 = arith.mulf %38, %39 : vector<8x42xf32>
    %41 = arith.addf %32, %40 : vector<8x42xf32>
    %42 = vector.extract_strided_slice %13 {offsets = [0, 3], sizes = [8, 1], strides = [1, 1]} : vector<8x42xf32> to vector<8x1xf32>
    %43 = vector.extract_strided_slice %41 {offsets = [0, 3], sizes = [8, 1], strides = [1, 1]} : vector<8x42xf32> to vector<8x1xf32>
    %44 = arith.addf %42, %43 : vector<8x1xf32>
    %45 = math.tanh %44 : vector<8x1xf32>
    %46 = vector.extract_strided_slice %5 {offsets = [3, 0], sizes = [1, 42], strides = [1, 1]} : vector<8x42xf32> to vector<1x42xf32>
    %47 = vector.broadcast %45 : vector<8x1xf32> to vector<8x42xf32>
    %48 = vector.broadcast %46 : vector<1x42xf32> to vector<8x42xf32>
    %49 = arith.mulf %47, %48 : vector<8x42xf32>
    %50 = arith.addf %41, %49 : vector<8x42xf32>
    %51 = vector.extract_strided_slice %13 {offsets = [0, 4], sizes = [8, 1], strides = [1, 1]} : vector<8x42xf32> to vector<8x1xf32>
    %52 = vector.extract_strided_slice %50 {offsets = [0, 4], sizes = [8, 1], strides = [1, 1]} : vector<8x42xf32> to vector<8x1xf32>
    %53 = arith.addf %51, %52 : vector<8x1xf32>
    %54 = math.tanh %53 : vector<8x1xf32>
    %55 = vector.extract_strided_slice %5 {offsets = [4, 0], sizes = [1, 42], strides = [1, 1]} : vector<8x42xf32> to vector<1x42xf32>
    %56 = vector.broadcast %54 : vector<8x1xf32> to vector<8x42xf32>
    %57 = vector.broadcast %55 : vector<1x42xf32> to vector<8x42xf32>
    %58 = arith.mulf %56, %57 : vector<8x42xf32>
    %59 = arith.addf %50, %58 : vector<8x42xf32>
    %60 = vector.extract_strided_slice %13 {offsets = [0, 5], sizes = [8, 1], strides = [1, 1]} : vector<8x42xf32> to vector<8x1xf32>
    %61 = vector.extract_strided_slice %59 {offsets = [0, 5], sizes = [8, 1], strides = [1, 1]} : vector<8x42xf32> to vector<8x1xf32>
    %62 = arith.addf %60, %61 : vector<8x1xf32>
    %63 = math.tanh %62 : vector<8x1xf32>
    %64 = vector.extract_strided_slice %5 {offsets = [5, 0], sizes = [1, 42], strides = [1, 1]} : vector<8x42xf32> to vector<1x42xf32>
    %65 = vector.broadcast %63 : vector<8x1xf32> to vector<8x42xf32>
    %66 = vector.broadcast %64 : vector<1x42xf32> to vector<8x42xf32>
    %67 = arith.mulf %65, %66 : vector<8x42xf32>
    %68 = arith.addf %59, %67 : vector<8x42xf32>
    %69 = vector.extract_strided_slice %13 {offsets = [0, 6], sizes = [8, 1], strides = [1, 1]} : vector<8x42xf32> to vector<8x1xf32>
    %70 = vector.extract_strided_slice %68 {offsets = [0, 6], sizes = [8, 1], strides = [1, 1]} : vector<8x42xf32> to vector<8x1xf32>
    %71 = arith.addf %69, %70 : vector<8x1xf32>
    %72 = math.tanh %71 : vector<8x1xf32>
    %73 = vector.extract_strided_slice %5 {offsets = [6, 0], sizes = [1, 42], strides = [1, 1]} : vector<8x42xf32> to vector<1x42xf32>
    %74 = vector.broadcast %72 : vector<8x1xf32> to vector<8x42xf32>
    %75 = vector.broadcast %73 : vector<1x42xf32> to vector<8x42xf32>
    %76 = arith.mulf %74, %75 : vector<8x42xf32>
    %77 = arith.addf %68, %76 : vector<8x42xf32>
    %78 = vector.extract_strided_slice %13 {offsets = [0, 7], sizes = [8, 1], strides = [1, 1]} : vector<8x42xf32> to vector<8x1xf32>
    %79 = vector.extract_strided_slice %77 {offsets = [0, 7], sizes = [8, 1], strides = [1, 1]} : vector<8x42xf32> to vector<8x1xf32>
    %80 = arith.addf %78, %79 : vector<8x1xf32>
    %81 = math.tanh %80 : vector<8x1xf32>
    %82 = vector.extract_strided_slice %5 {offsets = [7, 0], sizes = [1, 42], strides = [1, 1]} : vector<8x42xf32> to vector<1x42xf32>
    %83 = vector.broadcast %81 : vector<8x1xf32> to vector<8x42xf32>
    %84 = vector.broadcast %82 : vector<1x42xf32> to vector<8x42xf32>
    %85 = arith.mulf %83, %84 : vector<8x42xf32>
    %86 = arith.addf %77, %85 : vector<8x42xf32>
    %87 = arith.addf %13, %86 : vector<8x42xf32>
    %88 = vector.extract_strided_slice %87 {offsets = [0, 8], sizes = [8, 32], strides = [1, 1]} : vector<8x42xf32> to vector<8x32xf32>
    %89 = vector.extract_strided_slice %87 {offsets = [0, 40], sizes = [8, 2], strides = [1, 1]} : vector<8x42xf32> to vector<8x2xf32>
    %90 = arith.index_cast %c0_i32_8 : i32 to index
    %c0_12 = arith.constant 0 : index
    %c0_13 = arith.constant 0 : index
    %91 = vector.load %arg6[%90, %c0_12, %c0_13] : memref<1x8x2xf32, #tpu.memory_space<vmem>>, vector<1x8x2xf32>
    %92 = vector.shape_cast %91 : vector<1x8x2xf32> to vector<8x2xf32>
    %93 = vector.shape_cast %89 : vector<8x2xf32> to vector<1x8x2xf32>
    tpu.vector_store %arg6[%90, %c0_12, %c0_13], %93 {strides = array<i32>} : memref<1x8x2xf32, #tpu.memory_space<vmem>>, vector<1x8x2xf32>,
    %c1_i32 = arith.constant 1 : i32
    %c0_14 = arith.constant 0 : index
    %c0_15 = arith.constant 0 : index
    %94 = vector.load %arg8[%c0_14, %c0_15] : memref<8x32xf32, #tpu.memory_space<vmem>>, vector<8x32xf32>
    tpu.vector_store %arg8[%c0_14, %c0_15], %88 {strides = array<i32>} : memref<8x32xf32, #tpu.memory_space<vmem>>, vector<8x32xf32>,
    %c0_16 = arith.constant 0 : index
    %c0_17 = arith.constant 0 : index
    %95 = vector.load %arg7[%c0_16, %c0_17] : memref<8x32xf32, #tpu.memory_space<vmem>>, vector<8x32xf32>
    tpu.vector_store %arg7[%c0_16, %c0_17], %88 {strides = array<i32>} : memref<8x32xf32, #tpu.memory_space<vmem>>, vector<8x32xf32>,
    return
  }
  func.func @transform_0(%arg0: i32) -> (i32, i32, i32) {
    %c0_i32 = arith.constant 0 : i32
    %c0_i32_0 = arith.constant 0 : i32
    %c0_i32_1 = arith.constant 0 : i32
    return %arg0, %c0_i32, %c0_i32_0 : i32, i32, i32
  }
  func.func @transform_1(%arg0: i32) -> (i32, i32) {
    %c0_i32 = arith.constant 0 : i32
    %c0_i32_0 = arith.constant 0 : i32
    %c0_i32_1 = arith.constant 0 : i32
    return %c0_i32, %c0_i32_0 : i32, i32
  }
  func.func @transform_2(%arg0: i32) -> (i32, i32) {
    %c0_i32 = arith.constant 0 : i32
    %c0_i32_0 = arith.constant 0 : i32
    %c0_i32_1 = arith.constant 0 : i32
    return %c0_i32, %c0_i32_0 : i32, i32
  }
  func.func @transform_3(%arg0: i32) -> (i32, i32) {
    %c0_i32 = arith.constant 0 : i32
    %c0_i32_0 = arith.constant 0 : i32
    %c0_i32_1 = arith.constant 0 : i32
    return %c0_i32, %c0_i32_0 : i32, i32
  }
  func.func @transform_4(%arg0: i32) -> (i32, i32) {
    %c0_i32 = arith.constant 0 : i32
    %c0_i32_0 = arith.constant 0 : i32
    %c0_i32_1 = arith.constant 0 : i32
    return %c0_i32, %c0_i32_0 : i32, i32
  }
  func.func @transform_5(%arg0: i32) -> (i32, i32, i32) {
    %c0_i32 = arith.constant 0 : i32
    %c0_i32_0 = arith.constant 0 : i32
    %c0_i32_1 = arith.constant 0 : i32
    return %arg0, %c0_i32, %c0_i32_0 : i32, i32, i32
  }
  func.func @transform_6(%arg0: i32) -> (i32, i32) {
    %c0_i32 = arith.constant 0 : i32
    %c0_i32_0 = arith.constant 0 : i32
    %c0_i32_1 = arith.constant 0 : i32
    return %c0_i32, %c0_i32_0 : i32, i32
  }
}

</mosaic_0001>

<llo_original>
// kernel: controller_forward.1
$region0: #{controller_forward.1}
  #allocation0 [shape = 'u32[]', space=smem, size = 0x4, offset = 0x4, fixed_abs, tag = 'smem constant byte address 0x4 - core index']
  #allocation1 [shape = 'u32[72,128]{1,0:T(1,128)}', space=vmem, size = 0x9000, scoped, tag = 'internal scratch']
  #allocation2 [shape = 'f32[8,32]{1,0:T(8,128)}', space=vmem, size = 0x1000, scoped, tag = 'scratch operand']
  %s0 = inlined_call_operand.vmem [shape: f32[1,8,4], index: 0, kind: input, shape index: {}]
  %s1 = inlined_call_operand.vmem [shape: f32[8,32], index: 1, kind: input, shape index: {}]
  %s2 = inlined_call_operand.hbm [shape: f32[36,42], index: 2, kind: input, shape index: {}]
  %s3 = inlined_call_operand.vmem [shape: f32[1,42], index: 3, kind: input, shape index: {}]
  %s4 = inlined_call_operand.hbm [shape: f32[8,42], index: 4, kind: input, shape index: {}]
  %s5 = inlined_call_operand.vmem [shape: f32[1,8,2], index: 5, kind: output, shape index: {0}]
  %s6 = inlined_call_operand.hbm [shape: f32[8,32], index: 6, kind: output, shape index: {1}]
  %7 = xla_tuple %s5, %s6
  %s8 = sld [smem:[#allocation0]]
  $region50: #{controller_forward.1} parent=0
    _
  %s10 = ssub.s32 1, %s8
  %s11 = scalar_select 0, %s10, %s8
  $region1: #{controller_forward.1} parent=0
    #allocation3 [shape = 'u8[20480]{0}', space=vmem, size = 0x5000, scoped, tag = 'input window, operand 2, single buffered']
    #allocation4 [shape = 's32[1]{0}', space=sflag, size = 0x4, scoped, tag = 'scoped memory for controller_forward.1']
    #allocation5 [shape = 's32[1]{0}', space=sflag, size = 0x4, scoped, tag = 'scoped memory for controller_forward.1']
    #allocation6 [shape = 'u8[4096]{0}', space=vmem, size = 0x1000, scoped, tag = 'input window, operand 4, single buffered']
    #allocation7 [shape = 's32[1]{0}', space=sflag, size = 0x4, scoped, tag = 'scoped memory for controller_forward.1']
    #allocation8 [shape = 'u8[4096]{0}', space=vmem, size = 0x1000, scoped, tag = 'output window, operand 1, single buffered']
    %12 = vsyncpa [#allocation4], 0
    %13 = vsyncpa [#allocation7], 0
    %14 = vsyncpa [#allocation5], 0
    // Predicated region
    $region2: #{controller_forward.1} parent=1 // pred_check
      _
    $region3: #{controller_forward.1} parent=1 // pred_check_branch
      %16 = sbr.rel (0) target = $region5
    $region4: #{controller_forward.1} parent=1 // pred_region
      _
    $region5: #{controller_forward.1} parent=1 // pred_fallthru
      _
    // Predicated region
    $region6: #{controller_forward.1} parent=1 // pred_check
      _
    $region7: #{controller_forward.1} parent=1 // pred_check_branch
      %18 = sbr.rel (0) target = $region9
    $region8: #{controller_forward.1} parent=1 // pred_region
      _
    $region9: #{controller_forward.1} parent=1 // pred_fallthru
      _
    // Predicated region
    $region10: #{controller_forward.1} parent=1 // pred_check
      _
    $region11: #{controller_forward.1} parent=1 // pred_check_branch
      %20 = sbr.rel (0) target = $region13
    $region12: #{controller_forward.1} parent=1 // pred_region
      %22 = vsyncadd [#allocation4], 0
      %s23 = sshll.u32 %s2, 4
      %s24 = int_to_ptr.hbm [resolvable:$true] %s23
      %s25 = sshll.u32 [#allocation3], 4
      %s26 = int_to_ptr.vmem [resolvable:$true] %s25
      %31 = dma.hbm_to_vmem [thread:$0]  %s24, 640, %s26, [#allocation4], 128, 128, 8
    $region13: #{controller_forward.1} parent=1 // pred_fallthru
      _
    // Predicated region
    $region14: #{controller_forward.1} parent=1 // pred_check
      _
    $region15: #{controller_forward.1} parent=1 // pred_check_branch
      %33 = sbr.rel (0) target = $region17
    $region16: #{controller_forward.1} parent=1 // pred_region
      _
    $region17: #{controller_forward.1} parent=1 // pred_fallthru
      _
    // Predicated region
    $region18: #{controller_forward.1} parent=1 // pred_check
      _
    $region19: #{controller_forward.1} parent=1 // pred_check_branch
      %35 = sbr.rel (0) target = $region21
    $region20: #{controller_forward.1} parent=1 // pred_region
      %37 = vsyncadd [#allocation7], 0
      %s39 = sshll.u32 %s4, 4
      %s40 = int_to_ptr.hbm [resolvable:$true] %s39
      %s41 = sshll.u32 [#allocation6], 4
      %s42 = int_to_ptr.vmem [resolvable:$true] %s41
      %44 = dma.hbm_to_vmem [thread:$0]  %s40, 128, %s42, [#allocation7]
    $region21: #{controller_forward.1} parent=1 // pred_fallthru
      _
    // Predicated region
    $region22: #{controller_forward.1} parent=1 // pred_check
      _
    $region23: #{controller_forward.1} parent=1 // pred_check_branch
      %46 = sbr.rel (0) target = $region25
    $region24: #{controller_forward.1} parent=1 // pred_region
      %48 = dma.done [#allocation4], 640
    $region25: #{controller_forward.1} parent=1 // pred_fallthru
      _
    // Predicated region
    $region26: #{controller_forward.1} parent=1 // pred_check
      _
    $region27: #{controller_forward.1} parent=1 // pred_check_branch
      %50 = sbr.rel (0) target = $region29
    $region28: #{controller_forward.1} parent=1 // pred_region
      %52 = dma.done [#allocation7], 128
    $region29: #{controller_forward.1} parent=1 // pred_fallthru
      _
    %p53 = scmp.eq.s32.totalorder 0, 0
    // Predicated region
    $region30: #{controller_forward.1} parent=1 // pred_check
      %p54 = pneg %p53
    $region31: #{controller_forward.1} parent=1 // pred_check_branch
      %56 = sbr.rel (%p54) target = $region33
    $region32: #{controller_forward.1} parent=1 // pred_region
      %v57 = vld [vmem:[%s1] sm:$0xff]
      %vm58 = vcmask 261120
      %59 = vst.msk [vmem:[#allocation2] sm:$0xff] %vm58, %v57
    $region33: #{controller_forward.1} parent=1 // pred_fallthru
      _
    %v60 = vld [vmem:[#allocation3] sm:$0xff]
    %v61 = vld [vmem:[#allocation3 + $0x8] sm:$0xff]
    %v62 = vld [vmem:[#allocation3 + $0x10] sm:$0xff]
    %v63 = vld [vmem:[#allocation3 + $0x18] sm:$0xff]
    %v64 = vld [vmem:[#allocation3 + $0x20] sm:$0xf]
    %v65 = vld [vmem:[%s3] sm:$0x1]
    %v66 = vld [vmem:[#allocation6] sm:$0xff]
    %v67 = vld [vmem:[#allocation2] sm:$0xff]
    %v68 = vld [vmem:[%s0] sm:$0xff]
    %70 = vrot.lane.b32.xlu0 %v68, 32
    %v71 = vpop.permute.xlu0 %70
    %vm73 = vcmask 261120
    %v74 = vsel %vm73, %v67, %v71
    %v76 = vperm.slane %v65, 0
    %vm78 = vcmask 293888
    %v80 = vsel %vm78, %v74, 0
    %vm82 = vcmask 1043456
    %v84 = vsel %vm82, %v64, 0
    %86 = vmatpush.msra.mxu0 0.0
    %87 = vmatpush.msra.mxu0 0.0
    %88 = vmatpush.msra.mxu0 0.0
    %89 = vmatpush.msra.mxu0 0.0
    %90 = vmatpush.msra.mxu0 0.0
    %91 = vmatpush.msra.mxu0 0.0
    %92 = vmatpush.msra.mxu0 0.0
    %93 = vmatpush.msra.mxu0 0.0
    %94 = vmatpush.msra.mxu0 0.0
    %95 = vmatpush.msra.mxu0 0.0
    %96 = vmatpush.msra.mxu0 0.0
    %97 = vmatpush.msra.mxu0 %v84
    %98 = vmatpush.msra.mxu0 %v63
    %99 = vmatpush.msra.mxu0 %v62
    %100 = vmatpush.msra.mxu0 %v61
    %101 = vmatpush.msra.mxu0 %v60
    %102 = vmatmul.f32.gmra.mxu0 %v80
    %v103 = vpop.f32.mrf.mxu0
    %v104 = vadd.f32 %v76, %v103
    %105 = vdwg.mxu0
    %v106 = vadd.f32 %v104, 0.0
    %v107 = vtanh.pop %v106
    %109 = vset.pattern.permute.xlu0 0
    %110 = vperm.xlu0 %109, %v107
    %v111 = vpop.permute.xlu0 %110
    %v113 = vperm.slane %v66, 0
    %v114 = vmul.f32 %v111, %v113
    %v115 = vadd.f32 %v114, 0.0
    %v116 = vadd.f32 %v104, %v115
    %v117 = vtanh.pop %v116
    %119 = vset.pattern.permute.xlu0 1
    %120 = vperm.xlu0 %119, %v117
    %v121 = vpop.permute.xlu0 %120
    %v123 = vperm.slane %v66, 1
    %v124 = vmul.f32 %v121, %v123
    %v125 = vadd.f32 %v115, %v124
    %v126 = vadd.f32 %v104, %v125
    %v127 = vtanh.pop %v126
    %129 = vset.pattern.permute.xlu0 2
    %130 = vperm.xlu0 %129, %v127
    %v131 = vpop.permute.xlu0 %130
    %v133 = vperm.slane %v66, 2
    %v134 = vmul.f32 %v131, %v133
    %v135 = vadd.f32 %v125, %v134
    %v136 = vadd.f32 %v104, %v135
    %v137 = vtanh.pop %v136
    %139 = vset.pattern.permute.xlu0 3
    %140 = vperm.xlu0 %139, %v137
    %v141 = vpop.permute.xlu0 %140
    %v143 = vperm.slane %v66, 3
    %v144 = vmul.f32 %v141, %v143
    %v145 = vadd.f32 %v135, %v144
    %v146 = vadd.f32 %v104, %v145
    %v147 = vtanh.pop %v146
    %149 = vset.pattern.permute.xlu0 4
    %150 = vperm.xlu0 %149, %v147
    %v151 = vpop.permute.xlu0 %150
    %v153 = vperm.slane %v66, 4
    %v154 = vmul.f32 %v151, %v153
    %v155 = vadd.f32 %v145, %v154
    %v156 = vadd.f32 %v104, %v155
    %v157 = vtanh.pop %v156
    %159 = vset.pattern.permute.xlu0 5
    %160 = vperm.xlu0 %159, %v157
    %v161 = vpop.permute.xlu0 %160
    %v163 = vperm.slane %v66, 5
    %v164 = vmul.f32 %v161, %v163
    %v165 = vadd.f32 %v155, %v164
    %v166 = vadd.f32 %v104, %v165
    %v167 = vtanh.pop %v166
    %169 = vset.pattern.permute.xlu0 6
    %170 = vperm.xlu0 %169, %v167
    %v171 = vpop.permute.xlu0 %170
    %v173 = vperm.slane %v66, 6
    %v174 = vmul.f32 %v171, %v173
    %v175 = vadd.f32 %v165, %v174
    %v176 = vadd.f32 %v104, %v175
    %v177 = vtanh.pop %v176
    %179 = vset.pattern.permute.xlu0 7
    %180 = vperm.xlu0 %179, %v177
    %v181 = vpop.permute.xlu0 %180
    %v183 = vperm.slane %v66, 7
    %v184 = vmul.f32 %v181, %v183
    %v185 = vadd.f32 %v175, %v184
    %v186 = vadd.f32 %v104, %v185
    %188 = vrot.lane.b32.xlu0 %v186, 88
    %v189 = vpop.permute.xlu0 %188
    %vm191 = vcmask 15360
    %192 = vst.msk [vmem:[%s5] sm:$0xff] %vm191, %v189
    %193 = vrot.lane.b32.xlu0 %v186, 120
    %v194 = vpop.permute.xlu0 %193
    %196 = vst.msk [vmem:[#allocation2] sm:$0xff] %vm73, %v194
    %197 = vst.msk [vmem:[#allocation8] sm:$0xff] %vm73, %v194
    // Predicated region
    $region34: #{controller_forward.1} parent=1 // pred_check
      _
    $region35: #{controller_forward.1} parent=1 // pred_check_branch
      %199 = sbr.rel (0) target = $region37
    $region36: #{controller_forward.1} parent=1 // pred_region
      _
    $region37: #{controller_forward.1} parent=1 // pred_fallthru
      _
    // Predicated region
    $region38: #{controller_forward.1} parent=1 // pred_check
      _
    $region39: #{controller_forward.1} parent=1 // pred_check_branch
      %201 = sbr.rel (0) target = $region41
    $region40: #{controller_forward.1} parent=1 // pred_region
      %203 = vsyncadd [#allocation5], 0
      %s205 = sshll.u32 [#allocation8], 4
      %s206 = int_to_ptr.vmem [resolvable:$true] %s205
      %s207 = sshll.u32 %s6, 4
      %s208 = int_to_ptr.hbm [resolvable:$true] %s207
      %210 = dma.vmem_to_hbm [thread:$0]  %s206, 128, %s208, [#allocation5]
    $region41: #{controller_forward.1} parent=1 // pred_fallthru
      _
    // Predicated region
    $region42: #{controller_forward.1} parent=1 // pred_check
      _
    $region43: #{controller_forward.1} parent=1 // pred_check_branch
      %212 = sbr.rel (0) target = $region45
    $region44: #{controller_forward.1} parent=1 // pred_region
      _
    $region45: #{controller_forward.1} parent=1 // pred_fallthru
      _
    // Predicated region
    $region46: #{controller_forward.1} parent=1 // pred_check
      _
    $region47: #{controller_forward.1} parent=1 // pred_check_branch
      %214 = sbr.rel (0) target = $region49
    $region48: #{controller_forward.1} parent=1 // pred_region
      %216 = dma.done [#allocation5], 128
    $region49: #{controller_forward.1} parent=1 // pred_fallthru
      _
    %217 = vsyncpa [#allocation4], 1
    %218 = vsyncpa [#allocation7], 1
    %219 = vsyncpa [#allocation5], 1

</llo_original>
